<compile_context>
chip_gen: v5e
topology: v5e:2x2
jax: 0.10.0
libtpu: 0.0.40
codegen_flags: <defaults>
</compile_context>

<pallas_src>
import jax
import jax.numpy as jnp
from jax.experimental import pallas as pl
from jax.experimental.pallas import tpu as pltpu

EPS = 1e-5
K = 6        # module default kernel_size
STRIDE = 2   # module default stride
PAD = 8      # m0 = ZeroPad2d((8, 8, 0, 0)): pad the length dim by 8 on each side


# ------------------------------ fused kernel ------------------------------

def _residual_block_kernel(x_ref, w1_ref, b1_ref, w2_ref, b2_ref, o_ref):
    # x_ref : (1, half, 2*Cin)  m0-padded input, channel-last, consecutive sequence
    #         positions paired on the lane axis (so the stride-2 conv has unit-stride taps)
    # w1_ref: (6*Cin, C)  conv1 weight, rows ordered (k, c_in), bn1 folded in
    # b1_ref: (1, C)      conv1 bias with bn1 folded in
    # w2_ref: (6*C, C)    conv2 weight, rows ordered (k, c_in), bn2 folded in
    # b2_ref: (1, C)      conv2 bias with bn2 folded in
    # o_ref : (1, l2, C)  channel-last block output
    _, half, two_cin = x_ref.shape
    cin = two_cin // 2
    c = w1_ref.shape[1]
    l1 = half - 2        # conv1 output length: (L + 16 - 6)//2 + 1, with half = (L+16)//2
    l2 = half - 7        # conv2 / identity / output length: L//2 + 1

    y = x_ref[0]         # (half, 2*Cin)

    def mm(a, b):
        return jnp.dot(a, b, preferred_element_type=jnp.float32)

    # conv1 (k=6, stride=2) + folded bn1 + ReLU: 3 unit-stride taps over paired positions.
    h = mm(y[0:l1], w1_ref[0:two_cin])
    h = h + mm(y[1:l1 + 1], w1_ref[two_cin:2 * two_cin])
    h = h + mm(y[2:l1 + 2], w1_ref[2 * two_cin:3 * two_cin])
    h = jnp.maximum(h + b1_ref[...], 0.0)                         # (l1, C)

    # conv2 (k=6, stride=1) + folded bn2: 6 shifted taps accumulated on the MXU.
    acc = mm(h[0:l2], w2_ref[0:c]) + b2_ref[...]
    for k in range(1, K):
        acc = acc + mm(h[k:k + l2], w2_ref[k * c:(k + 1) * c])    # (l2, C)

    # Identity path: ones-weight 1x1 stride-2 conv of (left-padded x) + (right-padded x)
    # == per output position t: sum over input channels of x[2t-1] + x[2t] (zeros at the
    # ends, provided here by the m0 pad), identical for every output channel.
    u = jnp.sum(y[:, 0:cin], axis=-1, keepdims=True)              # row-sums, even positions
    v = jnp.sum(y[:, cin:two_cin], axis=-1, keepdims=True)        # row-sums, odd positions
    ident = v[3:3 + l2] + u[4:4 + l2]                             # (l2, 1)

    o_ref[0] = jnp.maximum(acc + ident, 0.0)


# ------------------------------ wrapper ------------------------------

def residual_block_forward(params, x):
    """x: (B, inchannels, L) float32 NCL (PyTorch layout), L even.
    Returns (B, channels, L//2 + 1) NCL, matching ResidualBlock.forward (eval mode)."""
    B, cin, L = x.shape
    C = params['conv1_w'].shape[0]
    assert L % 2 == 0, "stride-2 residual block needs an even input length"
    half = (L + 2 * PAD) // 2
    l2 = L // 2 + 1

    # Fold eval-mode BatchNorm into the conv weights/bias (trace-time, nothing extra
    # is shipped to the kernel).  Row order of the packed weights is (k, c_in).
    s1 = params['bn1_gamma'] * jax.lax.rsqrt(params['bn1_var'] + EPS)
    w1_mat = jnp.transpose(params['conv1_w'], (2, 1, 0)).reshape(K * cin, C) * s1[None, :]
    b1_vec = (params['conv1_b'] * s1 + params['bn1_beta'] - params['bn1_mean'] * s1).reshape(1, C)
    s2 = params['bn2_gamma'] * jax.lax.rsqrt(params['bn2_var'] + EPS)
    w2_mat = jnp.transpose(params['conv2_w'], (2, 1, 0)).reshape(K * C, C) * s2[None, :]
    b2_vec = (params['conv2_b'] * s2 + params['bn2_beta'] - params['bn2_mean'] * s2).reshape(1, C)

    # Layout plumbing (XLA fuses into one tiny copy): NCL -> channel-last, apply the m0
    # zero-pad, pair consecutive positions on the lane axis.
    x_cl = jnp.transpose(x, (0, 2, 1)).astype(jnp.float32)        # (B, L, Cin)
    x_pad = jnp.pad(x_cl, ((0, 0), (PAD, PAD), (0, 0)))           # (B, L+16, Cin)
    y_pairs = x_pad.reshape(B, half, 2 * cin)                     # (B, half, 2*Cin)

    out_nlc = pl.pallas_call(
        _residual_block_kernel,
        out_shape=jax.ShapeDtypeStruct((B, l2, C), jnp.float32),
        grid=(B,),
        in_specs=[
            pl.BlockSpec((1, half, 2 * cin), lambda b: (b, 0, 0)),
            pl.BlockSpec((K * cin, C), lambda b: (0, 0)),
            pl.BlockSpec((1, C), lambda b: (0, 0)),
            pl.BlockSpec((K * C, C), lambda b: (0, 0)),
            pl.BlockSpec((1, C), lambda b: (0, 0)),
        ],
        out_specs=pl.BlockSpec((1, l2, C), lambda b: (b, 0, 0)),
        compiler_params=pltpu.CompilerParams(dimension_semantics=("parallel",)),
    )(y_pairs, w1_mat, b1_vec, w2_mat, b2_vec)

    return jnp.transpose(out_nlc, (0, 2, 1))                      # back to NCL like torch


# ------------------------------ pure-JAX reference ------------------------------

def _conv1d(x, w, stride):
    dn = jax.lax.conv_dimension_numbers(x.shape, w.shape, ('NCH', 'OIH', 'NCH'))
    return jax.lax.conv_general_dilated(x, w, (stride,), 'VALID', dimension_numbers=dn,
                                        precision=jax.lax.Precision.HIGHEST)


def residual_block_reference(params, x):
    """Direct JAX transcription of ResidualBlock.forward (eval-mode BN)."""
    C, cin, _ = params['conv1_w'].shape

    def bn(z, g, b, m, v):
        s = g * jax.lax.rsqrt(v + EPS)
        return z * s[None, :, None] + (b - m * s)[None, :, None]

    ones_w = jnp.ones((C, cin, 1), jnp.float32)                   # frozen downsample1 weight
    identity = (_conv1d(jnp.pad(x, ((0, 0), (0, 0), (1, 0))), ones_w, 2) +     # m1
                _conv1d(jnp.pad(x, ((0, 0), (0, 0), (0, 1))), ones_w, 2))      # m2
    out = _conv1d(jnp.pad(x, ((0, 0), (0, 0), (PAD, PAD))), params['conv1_w'], 2)  # m0+conv1
    out = out + params['conv1_b'][None, :, None]
    out = jnp.maximum(bn(out, params['bn1_gamma'], params['bn1_beta'],
                         params['bn1_mean'], params['bn1_var']), 0.0)
    out = _conv1d(out, params['conv2_w'], 1) + params['conv2_b'][None, :, None]
    out = bn(out, params['bn2_gamma'], params['bn2_beta'],
             params['bn2_mean'], params['bn2_var'])
    out = out + identity
    return jnp.maximum(out, 0.0)


# ------------------------------ demo / self-check ------------------------------

if __name__ == "__main__":
    B, inchannels, channels, L = 2, 4, 16, 16
    key = jax.random.PRNGKey(0)
    ks = jax.random.split(key, 13)

    def nrm(k, shape, scale=0.3):
        return scale * jax.random.normal(k, shape, dtype=jnp.float32)

    params = {
        'conv1_w': nrm(ks[0], (channels, inchannels, K)),
        'conv1_b': nrm(ks[1], (channels,), 0.1),
        'bn1_gamma': 1.0 + nrm(ks[2], (channels,), 0.1),
        'bn1_beta': nrm(ks[3], (channels,), 0.1),
        'bn1_mean': nrm(ks[4], (channels,), 0.1),
        'bn1_var': 1.0 + 0.1 * jnp.abs(jax.random.normal(ks[5], (channels,), dtype=jnp.float32)),
        'conv2_w': nrm(ks[6], (channels, channels, K)),
        'conv2_b': nrm(ks[7], (channels,), 0.1),
        'bn2_gamma': 1.0 + nrm(ks[8], (channels,), 0.1),
        'bn2_beta': nrm(ks[9], (channels,), 0.1),
        'bn2_mean': nrm(ks[10], (channels,), 0.1),
        'bn2_var': 1.0 + 0.1 * jnp.abs(jax.random.normal(ks[11], (channels,), dtype=jnp.float32)),
    }
    x = jax.random.normal(ks[12], (B, inchannels, L), dtype=jnp.float32)

    out = jax.jit(residual_block_forward)(params, x)
    jax.block_until_ready(out)

    ref = residual_block_reference(params, x)
    assert out.shape == (B, channels, L // 2 + 1) and out.dtype == jnp.float32
    assert jnp.allclose(out, ref, atol=5e-2, rtol=1e-2), float(jnp.max(jnp.abs(out - ref)))
    print("KERNEL_OK")
</pallas_src>

<mosaic_0001>
module attributes {stable_mosaic.version = 11 : i64} {
  func.func @_residual_block_kernel(%arg0: i32, %arg1: memref<1x16x8xf32, #tpu.memory_space<vmem>>, %arg2: memref<24x16xf32, #tpu.memory_space<vmem>>, %arg3: memref<1x16xf32, #tpu.memory_space<vmem>>, %arg4: memref<96x16xf32, #tpu.memory_space<vmem>>, %arg5: memref<1x16xf32, #tpu.memory_space<vmem>>, %arg6: memref<1x9x16xf32, #tpu.memory_space<vmem>>) attributes {dimension_semantics = [#tpu.dimension_semantics<parallel>], iteration_bounds = array<i64: 2>, scalar_prefetch = 0 : i64, scratch_operands = 0 : i64, tpu.core_type = #tpu.core_type<tc>, window_params = [{transform_indices = @transform_0, window_bounds = array<i64: 1, 16, 8>}, {pipeline_mode = #tpu.pipeline_mode<synchronous>, transform_indices = @transform_1, window_bounds = array<i64: 24, 16>}, {pipeline_mode = #tpu.pipeline_mode<synchronous>, transform_indices = @transform_2, window_bounds = array<i64: 1, 16>}, {pipeline_mode = #tpu.pipeline_mode<synchronous>, transform_indices = @transform_3, window_bounds = array<i64: 96, 16>}, {pipeline_mode = #tpu.pipeline_mode<synchronous>, transform_indices = @transform_4, window_bounds = array<i64: 1, 16>}, {transform_indices = @transform_5, window_bounds = array<i64: 1, 9, 16>}]} {
    %c0 = arith.constant 0 : index
    %c0_0 = arith.constant 0 : index
    %c0_1 = arith.constant 0 : index
    %0 = vector.load %arg1[%c0, %c0_0, %c0_1] : memref<1x16x8xf32, #tpu.memory_space<vmem>>, vector<1x16x8xf32>
    %1 = vector.shape_cast %0 : vector<1x16x8xf32> to vector<16x8xf32>
    %2 = vector.extract_strided_slice %1 {offsets = [0, 0], sizes = [14, 8], strides = [1, 1]} : vector<16x8xf32> to vector<14x8xf32>
    %c0_2 = arith.constant 0 : index
    %c0_3 = arith.constant 0 : index
    %3 = vector.load %arg2[%c0_2, %c0_3] : memref<24x16xf32, #tpu.memory_space<vmem>>, vector<8x16xf32>
    %cst = arith.constant dense<0.000000e+00> : vector<14x16xf32>
    %4 = tpu.matmul %2, %3, %cst {dimension_numbers = #tpu.dot_dimension_numbers<[1], [0], [0], [1], [0, 0, 1, 1], [], []>} : vector<14x8xf32>, vector<8x16xf32>, vector<14x16xf32> -> vector<14x16xf32>
    %5 = vector.extract_strided_slice %1 {offsets = [1, 0], sizes = [14, 8], strides = [1, 1]} : vector<16x8xf32> to vector<14x8xf32>
    %c8 = arith.constant 8 : index
    %c0_4 = arith.constant 0 : index
    %6 = vector.load %arg2[%c8, %c0_4] : memref<24x16xf32, #tpu.memory_space<vmem>>, vector<8x16xf32>
    %cst_5 = arith.constant dense<0.000000e+00> : vector<14x16xf32>
    %7 = tpu.matmul %5, %6, %cst_5 {dimension_numbers = #tpu.dot_dimension_numbers<[1], [0], [0], [1], [0, 0, 1, 1], [], []>} : vector<14x8xf32>, vector<8x16xf32>, vector<14x16xf32> -> vector<14x16xf32>
    %8 = arith.addf %4, %7 : vector<14x16xf32>
    %9 = vector.extract_strided_slice %1 {offsets = [2, 0], sizes = [14, 8], strides = [1, 1]} : vector<16x8xf32> to vector<14x8xf32>
    %c16 = arith.constant 16 : index
    %c0_6 = arith.constant 0 : index
    %10 = vector.load %arg2[%c16, %c0_6] : memref<24x16xf32, #tpu.memory_space<vmem>>, vector<8x16xf32>
    %cst_7 = arith.constant dense<0.000000e+00> : vector<14x16xf32>
    %11 = tpu.matmul %9, %10, %cst_7 {dimension_numbers = #tpu.dot_dimension_numbers<[1], [0], [0], [1], [0, 0, 1, 1], [], []>} : vector<14x8xf32>, vector<8x16xf32>, vector<14x16xf32> -> vector<14x16xf32>
    %12 = arith.addf %8, %11 : vector<14x16xf32>
    %c0_8 = arith.constant 0 : index
    %c0_9 = arith.constant 0 : index
    %13 = vector.load %arg3[%c0_8, %c0_9] : memref<1x16xf32, #tpu.memory_space<vmem>>, vector<1x16xf32>
    %14 = vector.broadcast %13 : vector<1x16xf32> to vector<14x16xf32>
    %15 = arith.addf %12, %14 : vector<14x16xf32>
    %cst_10 = arith.constant 0.000000e+00 : f32
    %16 = vector.broadcast %cst_10 : f32 to vector<14x16xf32>
    %17 = arith.maximumf %15, %16 : vector<14x16xf32>
    %18 = vector.extract_strided_slice %17 {offsets = [0, 0], sizes = [9, 16], strides = [1, 1]} : vector<14x16xf32> to vector<9x16xf32>
    %c0_11 = arith.constant 0 : index
    %c0_12 = arith.constant 0 : index
    %19 = vector.load %arg4[%c0_11, %c0_12] : memref<96x16xf32, #tpu.memory_space<vmem>>, vector<16x16xf32>
    %cst_13 = arith.constant dense<0.000000e+00> : vector<9x16xf32>
    %20 = tpu.matmul %18, %19, %cst_13 {dimension_numbers = #tpu.dot_dimension_numbers<[1], [0], [0], [1], [0, 0, 1, 1], [], []>} : vector<9x16xf32>, vector<16x16xf32>, vector<9x16xf32> -> vector<9x16xf32>
    %c0_14 = arith.constant 0 : index
    %c0_15 = arith.constant 0 : index
    %21 = vector.load %arg5[%c0_14, %c0_15] : memref<1x16xf32, #tpu.memory_space<vmem>>, vector<1x16xf32>
    %22 = vector.broadcast %21 : vector<1x16xf32> to vector<9x16xf32>
    %23 = arith.addf %20, %22 : vector<9x16xf32>
    %24 = vector.extract_strided_slice %17 {offsets = [1, 0], sizes = [9, 16], strides = [1, 1]} : vector<14x16xf32> to vector<9x16xf32>
    %c16_16 = arith.constant 16 : index
    %c0_17 = arith.constant 0 : index
    %25 = vector.load %arg4[%c16_16, %c0_17] : memref<96x16xf32, #tpu.memory_space<vmem>>, vector<16x16xf32>
    %cst_18 = arith.constant dense<0.000000e+00> : vector<9x16xf32>
    %26 = tpu.matmul %24, %25, %cst_18 {dimension_numbers = #tpu.dot_dimension_numbers<[1], [0], [0], [1], [0, 0, 1, 1], [], []>} : vector<9x16xf32>, vector<16x16xf32>, vector<9x16xf32> -> vector<9x16xf32>
    %27 = arith.addf %23, %26 : vector<9x16xf32>
    %28 = vector.extract_strided_slice %17 {offsets = [2, 0], sizes = [9, 16], strides = [1, 1]} : vector<14x16xf32> to vector<9x16xf32>
    %c32 = arith.constant 32 : index
    %c0_19 = arith.constant 0 : index
    %29 = vector.load %arg4[%c32, %c0_19] : memref<96x16xf32, #tpu.memory_space<vmem>>, vector<16x16xf32>
    %cst_20 = arith.constant dense<0.000000e+00> : vector<9x16xf32>
    %30 = tpu.matmul %28, %29, %cst_20 {dimension_numbers = #tpu.dot_dimension_numbers<[1], [0], [0], [1], [0, 0, 1, 1], [], []>} : vector<9x16xf32>, vector<16x16xf32>, vector<9x16xf32> -> vector<9x16xf32>
    %31 = arith.addf %27, %30 : vector<9x16xf32>
    %32 = vector.extract_strided_slice %17 {offsets = [3, 0], sizes = [9, 16], strides = [1, 1]} : vector<14x16xf32> to vector<9x16xf32>
    %c48 = arith.constant 48 : index
    %c0_21 = arith.constant 0 : index
    %33 = vector.load %arg4[%c48, %c0_21] : memref<96x16xf32, #tpu.memory_space<vmem>>, vector<16x16xf32>
    %cst_22 = arith.constant dense<0.000000e+00> : vector<9x16xf32>
    %34 = tpu.matmul %32, %33, %cst_22 {dimension_numbers = #tpu.dot_dimension_numbers<[1], [0], [0], [1], [0, 0, 1, 1], [], []>} : vector<9x16xf32>, vector<16x16xf32>, vector<9x16xf32> -> vector<9x16xf32>
    %35 = arith.addf %31, %34 : vector<9x16xf32>
    %36 = vector.extract_strided_slice %17 {offsets = [4, 0], sizes = [9, 16], strides = [1, 1]} : vector<14x16xf32> to vector<9x16xf32>
    %c64 = arith.constant 64 : index
    %c0_23 = arith.constant 0 : index
    %37 = vector.load %arg4[%c64, %c0_23] : memref<96x16xf32, #tpu.memory_space<vmem>>, vector<16x16xf32>
    %cst_24 = arith.constant dense<0.000000e+00> : vector<9x16xf32>
    %38 = tpu.matmul %36, %37, %cst_24 {dimension_numbers = #tpu.dot_dimension_numbers<[1], [0], [0], [1], [0, 0, 1, 1], [], []>} : vector<9x16xf32>, vector<16x16xf32>, vector<9x16xf32> -> vector<9x16xf32>
    %39 = arith.addf %35, %38 : vector<9x16xf32>
    %40 = vector.extract_strided_slice %17 {offsets = [5, 0], sizes = [9, 16], strides = [1, 1]} : vector<14x16xf32> to vector<9x16xf32>
    %c80 = arith.constant 80 : index
    %c0_25 = arith.constant 0 : index
    %41 = vector.load %arg4[%c80, %c0_25] : memref<96x16xf32, #tpu.memory_space<vmem>>, vector<16x16xf32>
    %cst_26 = arith.constant dense<0.000000e+00> : vector<9x16xf32>
    %42 = tpu.matmul %40, %41, %cst_26 {dimension_numbers = #tpu.dot_dimension_numbers<[1], [0], [0], [1], [0, 0, 1, 1], [], []>} : vector<9x16xf32>, vector<16x16xf32>, vector<9x16xf32> -> vector<9x16xf32>
    %43 = arith.addf %39, %42 : vector<9x16xf32>
    %44 = vector.extract_strided_slice %1 {offsets = [0, 0], sizes = [16, 4], strides = [1, 1]} : vector<16x8xf32> to vector<16x4xf32>
    %cst_27 = arith.constant dense<0.000000e+00> : vector<16xf32>
    %45 = vector.multi_reduction <add>, %44, %cst_27 [1] : vector<16x4xf32> to vector<16xf32>
    %46 = vector.shape_cast %45 : vector<16xf32> to vector<16x1xf32>
    %47 = vector.extract_strided_slice %1 {offsets = [0, 4], sizes = [16, 4], strides = [1, 1]} : vector<16x8xf32> to vector<16x4xf32>
    %cst_28 = arith.constant dense<0.000000e+00> : vector<16xf32>
    %48 = vector.multi_reduction <add>, %47, %cst_28 [1] : vector<16x4xf32> to vector<16xf32>
    %49 = vector.shape_cast %48 : vector<16xf32> to vector<16x1xf32>
    %50 = vector.extract_strided_slice %49 {offsets = [3, 0], sizes = [9, 1], strides = [1, 1]} : vector<16x1xf32> to vector<9x1xf32>
    %51 = vector.extract_strided_slice %46 {offsets = [4, 0], sizes = [9, 1], strides = [1, 1]} : vector<16x1xf32> to vector<9x1xf32>
    %52 = arith.addf %50, %51 : vector<9x1xf32>
    %53 = vector.broadcast %52 : vector<9x1xf32> to vector<9x16xf32>
    %54 = arith.addf %43, %53 : vector<9x16xf32>
    %cst_29 = arith.constant 0.000000e+00 : f32
    %55 = vector.broadcast %cst_29 : f32 to vector<9x16xf32>
    %56 = arith.maximumf %54, %55 : vector<9x16xf32>
    %c0_30 = arith.constant 0 : index
    %c0_31 = arith.constant 0 : index
    %c0_32 = arith.constant 0 : index
    %57 = vector.load %arg6[%c0_30, %c0_31, %c0_32] : memref<1x9x16xf32, #tpu.memory_space<vmem>>, vector<1x9x16xf32>
    %58 = vector.shape_cast %57 : vector<1x9x16xf32> to vector<9x16xf32>
    %59 = vector.shape_cast %56 : vector<9x16xf32> to vector<1x9x16xf32>
    tpu.vector_store %arg6[%c0_30, %c0_31, %c0_32], %59 {strides = array<i32>} : memref<1x9x16xf32, #tpu.memory_space<vmem>>, vector<1x9x16xf32>,
    return
  }
  func.func @transform_0(%arg0: i32) -> (i32, i32, i32) {
    %c0_i32 = arith.constant 0 : i32
    %c0_i32_0 = arith.constant 0 : i32
    %c0_i32_1 = arith.constant 0 : i32
    return %arg0, %c0_i32, %c0_i32_0 : i32, i32, i32
  }
  func.func @transform_1(%arg0: i32) -> (i32, i32) {
    %c0_i32 = arith.constant 0 : i32
    %c0_i32_0 = arith.constant 0 : i32
    %c0_i32_1 = arith.constant 0 : i32
    return %c0_i32, %c0_i32_0 : i32, i32
  }
  func.func @transform_2(%arg0: i32) -> (i32, i32) {
    %c0_i32 = arith.constant 0 : i32
    %c0_i32_0 = arith.constant 0 : i32
    %c0_i32_1 = arith.constant 0 : i32
    return %c0_i32, %c0_i32_0 : i32, i32
  }
  func.func @transform_3(%arg0: i32) -> (i32, i32) {
    %c0_i32 = arith.constant 0 : i32
    %c0_i32_0 = arith.constant 0 : i32
    %c0_i32_1 = arith.constant 0 : i32
    return %c0_i32, %c0_i32_0 : i32, i32
  }
  func.func @transform_4(%arg0: i32) -> (i32, i32) {
    %c0_i32 = arith.constant 0 : i32
    %c0_i32_0 = arith.constant 0 : i32
    %c0_i32_1 = arith.constant 0 : i32
    return %c0_i32, %c0_i32_0 : i32, i32
  }
  func.func @transform_5(%arg0: i32) -> (i32, i32, i32) {
    %c0_i32 = arith.constant 0 : i32
    %c0_i32_0 = arith.constant 0 : i32
    %c0_i32_1 = arith.constant 0 : i32
    return %arg0, %c0_i32, %c0_i32_0 : i32, i32, i32
  }
}

</mosaic_0001>

<llo_original>
// kernel: residual_block_forward.1
$region0: #{residual_block_forward.1}
  #allocation0 [shape = 'u32[]', space=smem, size = 0x4, offset = 0x4, fixed_abs, tag = 'smem constant byte address 0x4 - core index']
  #allocation1 [shape = 'u32[72,128]{1,0:T(1,128)}', space=vmem, size = 0x9000, scoped, tag = 'internal scratch']
  %s0 = inlined_call_operand.vmem [shape: f32[2,16,8], index: 0, kind: input, shape index: {}]
  %s1 = inlined_call_operand.vmem [shape: f32[24,16], index: 1, kind: input, shape index: {}]
  %s2 = inlined_call_operand.vmem [shape: f32[1,16], index: 2, kind: input, shape index: {}]
  %s3 = inlined_call_operand.vmem [shape: f32[96,16], index: 3, kind: input, shape index: {}]
  %s4 = inlined_call_operand.vmem [shape: f32[1,16], index: 4, kind: input, shape index: {}]
  %s5 = inlined_call_operand.vmem [shape: f32[2,9,16], index: 5, kind: output, shape index: {}]
  %s6 = sld [smem:[#allocation0]]
  $region53: #{residual_block_forward.1} parent=0
    _
  %s8 = ssub.s32 1, %s6
  %s9 = scalar_select 0, %s8, %s6
  loop: start=0, step=1, limit=4
  $region2: #{residual_block_forward.1} parent=0 // loop_pre_header
    _
  $region3: #{residual_block_forward.1} parent=0 // loop_header
    %s11 = sphi 0, %s15
    %p12 = scmp.ge.s32.totalorder %s11, 4
    %s21 = sphi 0, %s23
    %s24 = sphi 0, %s21
    %s25 = sphi 0, %s24
    %s41 = sphi 0, %s25
    %s45 = sphi 0, %s45
    %s47 = sphi 0, %s45
    %s48 = sphi 0, %s47
    %s62 = sphi 0, %s48
    %s66 = sphi 0, %s66
    %s68 = sphi 0, %s66
    %s69 = sphi 0, %s68
    %s83 = sphi 0, %s69
    %s87 = sphi 0, %s87
    %s89 = sphi 0, %s87
    %s90 = sphi 0, %s89
    %s104 = sphi 0, %s90
    %s108 = sphi 0, %s108
    %s110 = sphi 0, %s108
    %s111 = sphi 0, %s110
    %s125 = sphi 0, %s111
    %s131 = sphi 0, %s133
    %s134 = sphi 0, %s131
    %s135 = sphi 0, %s134
    %s151 = sphi 0, %s135
  $region4: #{residual_block_forward.1} parent=0 // loop_header_branch
    %14 = sbr.rel (%p12) target = $region8
  $region5: #{residual_block_forward.1} parent=0 // loop_body
    %s16 = ssub.s32 %s11, 1
    %s17 = ssub.s32 %s11, 2
    %s18 = sadd.s32 %s11, 1
    %s19 = ssub.s32 %s11, %s18
    %p20 = scmp.eq.s32.totalorder %s19, 0
    %s22 = sadd.s32 %s21, 1
    %s23 = scalar_select %p20, %s21, %s22
    %p26 = pneg %p20
    %p27 = scmp.eq.s32.totalorder %s11, 1
    %p28 = por %p26, %p27
    %p29 = scmp.ne.s32.totalorder %s21, %s24
    %p30 = scmp.eq.s32.totalorder %s11, 0
    %p31 = por %p29, %p30
    %p32 = scmp.ne.s32.totalorder %s21, %s24
    %p33 = scmp.eq.s32.totalorder %s16, 1
    %p34 = por %p32, %p33
    %p35 = scmp.ne.s32.totalorder %s24, %s25
    %p36 = scmp.eq.s32.totalorder %s16, 0
    %p37 = por %p35, %p36
    %p38 = scmp.ne.s32.totalorder %s24, %s25
    %p39 = scmp.eq.s32.totalorder %s17, 1
    %p40 = por %p38, %p39
    %p42 = scmp.ne.s32.totalorder %s25, %s41
    %p43 = scmp.eq.s32.totalorder %s17, 0
    %p44 = por %p42, %p43
    %s46 = sadd.s32 %s45, 1
    %p49 = scmp.eq.s32.totalorder %s11, 1
    %p50 = scmp.ne.s32.totalorder %s45, %s47
    %p51 = scmp.eq.s32.totalorder %s11, 0
    %p52 = por %p50, %p51
    %p53 = scmp.ne.s32.totalorder %s45, %s47
    %p54 = scmp.eq.s32.totalorder %s16, 1
    %p55 = por %p53, %p54
    %p56 = scmp.ne.s32.totalorder %s47, %s48
    %p57 = scmp.eq.s32.totalorder %s16, 0
    %p58 = por %p56, %p57
    %p59 = scmp.ne.s32.totalorder %s47, %s48
    %p60 = scmp.eq.s32.totalorder %s17, 1
    %p61 = por %p59, %p60
    %p63 = scmp.ne.s32.totalorder %s48, %s62
    %p64 = scmp.eq.s32.totalorder %s17, 0
    %p65 = por %p63, %p64
    %s67 = sadd.s32 %s66, 1
    %p70 = scmp.eq.s32.totalorder %s11, 1
    %p71 = scmp.ne.s32.totalorder %s66, %s68
    %p72 = scmp.eq.s32.totalorder %s11, 0
    %p73 = por %p71, %p72
    %p74 = scmp.ne.s32.totalorder %s66, %s68
    %p75 = scmp.eq.s32.totalorder %s16, 1
    %p76 = por %p74, %p75
    %p77 = scmp.ne.s32.totalorder %s68, %s69
    %p78 = scmp.eq.s32.totalorder %s16, 0
    %p79 = por %p77, %p78
    %p80 = scmp.ne.s32.totalorder %s68, %s69
    %p81 = scmp.eq.s32.totalorder %s17, 1
    %p82 = por %p80, %p81
    %p84 = scmp.ne.s32.totalorder %s69, %s83
    %p85 = scmp.eq.s32.totalorder %s17, 0
    %p86 = por %p84, %p85
    %s88 = sadd.s32 %s87, 1
    %p91 = scmp.eq.s32.totalorder %s11, 1
    %p92 = scmp.ne.s32.totalorder %s87, %s89
    %p93 = scmp.eq.s32.totalorder %s11, 0
    %p94 = por %p92, %p93
    %p95 = scmp.ne.s32.totalorder %s87, %s89
    %p96 = scmp.eq.s32.totalorder %s16, 1
    %p97 = por %p95, %p96
    %p98 = scmp.ne.s32.totalorder %s89, %s90
    %p99 = scmp.eq.s32.totalorder %s16, 0
    %p100 = por %p98, %p99
    %p101 = scmp.ne.s32.totalorder %s89, %s90
    %p102 = scmp.eq.s32.totalorder %s17, 1
    %p103 = por %p101, %p102
    %p105 = scmp.ne.s32.totalorder %s90, %s104
    %p106 = scmp.eq.s32.totalorder %s17, 0
    %p107 = por %p105, %p106
    %s109 = sadd.s32 %s108, 1
    %p112 = scmp.eq.s32.totalorder %s11, 1
    %p113 = scmp.ne.s32.totalorder %s108, %s110
    %p114 = scmp.eq.s32.totalorder %s11, 0
    %p115 = por %p113, %p114
    %p116 = scmp.ne.s32.totalorder %s108, %s110
    %p117 = scmp.eq.s32.totalorder %s16, 1
    %p118 = por %p116, %p117
    %p119 = scmp.ne.s32.totalorder %s110, %s111
    %p120 = scmp.eq.s32.totalorder %s16, 0
    %p121 = por %p119, %p120
    %p122 = scmp.ne.s32.totalorder %s110, %s111
    %p123 = scmp.eq.s32.totalorder %s17, 1
    %p124 = por %p122, %p123
    %p126 = scmp.ne.s32.totalorder %s111, %s125
    %p127 = scmp.eq.s32.totalorder %s17, 0
    %p128 = por %p126, %p127
    %s129 = ssub.s32 %s11, %s18
    %p130 = scmp.eq.s32.totalorder %s129, 0
    %s132 = sadd.s32 %s131, 1
    %s133 = scalar_select %p130, %s131, %s132
    %p136 = pneg %p130
    %p137 = scmp.eq.s32.totalorder %s11, 1
    %p138 = por %p136, %p137
    %p139 = scmp.ne.s32.totalorder %s131, %s134
    %p140 = scmp.eq.s32.totalorder %s11, 0
    %p141 = por %p139, %p140
    %p142 = scmp.ne.s32.totalorder %s131, %s134
    %p143 = scmp.eq.s32.totalorder %s16, 1
    %p144 = por %p142, %p143
    %p145 = scmp.ne.s32.totalorder %s134, %s135
    %p146 = scmp.eq.s32.totalorder %s16, 0
    %p147 = por %p145, %p146
    %p148 = scmp.ne.s32.totalorder %s134, %s135
    %p149 = scmp.eq.s32.totalorder %s17, 1
    %p150 = por %p148, %p149
    %p152 = scmp.ne.s32.totalorder %s135, %s151
    %p153 = scmp.eq.s32.totalorder %s17, 0
    %p154 = por %p152, %p153
    %p155 = scmp.le.s32.totalorder 1, %s11
    %p156 = scmp.lt.s32.totalorder %s11, 3
    %p157 = pnand %p155, %p156
    %p158 = pneg %p157
    // Predicated region
    $region9: #{residual_block_forward.1} parent=5 // pred_check
      _
    $region10: #{residual_block_forward.1} parent=5 // pred_check_branch
      %160 = sbr.rel (%p157) target = $region12
    $region11: #{residual_block_forward.1} parent=5 // pred_region
      %s161 = ssub.s32 %s11, 1
      // Predicated region
      $region13: #{residual_block_forward.1} parent=11 // pred_check
        %p162 = pneg %p58
      $region14: #{residual_block_forward.1} parent=11 // pred_check_branch
        %164 = sbr.rel (%p162) target = $region16
      $region15: #{residual_block_forward.1} parent=11 // pred_region
        _
      $region16: #{residual_block_forward.1} parent=11 // pred_fallthru
        _
      // Predicated region
      $region17: #{residual_block_forward.1} parent=11 // pred_check
        %p165 = pneg %p79
      $region18: #{residual_block_forward.1} parent=11 // pred_check_branch
        %167 = sbr.rel (%p165) target = $region20
      $region19: #{residual_block_forward.1} parent=11 // pred_region
        _
      $region20: #{residual_block_forward.1} parent=11 // pred_fallthru
        _
      // Predicated region
      $region21: #{residual_block_forward.1} parent=11 // pred_check
        %p168 = pneg %p100
      $region22: #{residual_block_forward.1} parent=11 // pred_check_branch
        %170 = sbr.rel (%p168) target = $region24
      $region23: #{residual_block_forward.1} parent=11 // pred_region
        _
      $region24: #{residual_block_forward.1} parent=11 // pred_fallthru
        _
      // Predicated region
      $region25: #{residual_block_forward.1} parent=11 // pred_check
        %p171 = pneg %p121
      $region26: #{residual_block_forward.1} parent=11 // pred_check_branch
        %173 = sbr.rel (%p171) target = $region28
      $region27: #{residual_block_forward.1} parent=11 // pred_region
        _
      $region28: #{residual_block_forward.1} parent=11 // pred_fallthru
        _
    $region12: #{residual_block_forward.1} parent=5 // pred_fallthru
      _
    %p174 = scmp.lt.s32.totalorder %s11, 2
    // Predicated region
    $region29: #{residual_block_forward.1} parent=5 // pred_check
      %p175 = pneg %p174
    $region30: #{residual_block_forward.1} parent=5 // pred_check_branch
      %177 = sbr.rel (%p175) target = $region32
    $region31: #{residual_block_forward.1} parent=5 // pred_region
      // Predicated region
      $region33: #{residual_block_forward.1} parent=31 // pred_check
        %p178 = pneg %p31
      $region34: #{residual_block_forward.1} parent=31 // pred_check_branch
        %180 = sbr.rel (%p178) target = $region36
      $region35: #{residual_block_forward.1} parent=31 // pred_region
        %p181 = scmp.lt.s32.totalorder %s11, 1
        %s182 = scalar_select %p181, %s11, 1
        %s183 = smul.addr %s182, 2
        %s184 = smul.addr %s183, 8
        %s185 = scalar_lea.vmem %s0, %s184
      $region36: #{residual_block_forward.1} parent=31 // pred_fallthru
        _
    $region32: #{residual_block_forward.1} parent=5 // pred_fallthru
      _
    %p186 = scmp.le.s32.totalorder 1, %s11
    %p187 = scmp.lt.s32.totalorder %s11, 3
    %p188 = pnand %p186, %p187
    %p189 = pneg %p188
    // Predicated region
    $region37: #{residual_block_forward.1} parent=5 // pred_check
      _
    $region38: #{residual_block_forward.1} parent=5 // pred_check_branch
      %191 = sbr.rel (%p188) target = $region40
    $region39: #{residual_block_forward.1} parent=5 // pred_region
      %s192 = ssub.s32 %s11, 1
      %p193 = scmp.lt.s32.totalorder %s16, 1
      %s194 = scalar_select %p193, %s16, 1
      %s195 = smul.addr %s194, 2
      %s196 = smul.addr %s195, 8
      %s197 = scalar_lea.vmem %s0, %s196
      %p198 = pneg %p37
      %p199 = pneg %p34
      %p200 = pneg %p58
      %p201 = pneg %p55
      %p202 = pneg %p79
      %p203 = pneg %p76
      %p204 = pneg %p100
      %p205 = pneg %p97
      %p206 = pneg %p121
      %p207 = pneg %p118
      %p208 = pneg %p147
      %p209 = pneg %p144
      %p210 = scmp.lt.s32.totalorder %s16, 1
      %s211 = scalar_select %p210, %s16, 1
      %s212 = smul.addr %s211, 2
      %s213 = smul.addr %s212, 8
      %s214 = scalar_lea.vmem %s5, %s213
      %p215 = scmp.lt.s32.totalorder %s16, 1
      %s216 = scalar_select %p215, %s16, 1
      %s217 = smul.addr %s216, 2
      %s218 = smul.addr %s217, 8
      %s219 = scalar_lea.vmem %s0, %s218
      %p220 = scmp.lt.s32.totalorder %s16, 1
      %s221 = scalar_select %p220, %s16, 1
      %s222 = smul.addr %s221, 2
      %s223 = smul.addr %s222, 8
      %s224 = scalar_lea.vmem %s5, %s223
      %v225 = vld [vmem:[%s219] sm:$0xff]
      %v226 = vld [vmem:[%s219 + $0x8] sm:$0xff]
      %v227 = vld [vmem:[%s1] sm:$0xff]
      %v228 = vld [vmem:[%s1 + $0x8] sm:$0xff]
      %vm231 = vcmask 1046528
      %v232 = vrot.slane %v225, 1
      %v233 = vrot.slane %v226, 1
      %v234 = vsel %vm231, %v232, %v233
      %vm235 = vcmask 64512
      %v236 = vsel %vm235, %v234, 0
      %v238 = vsel %vm235, %v233, 0
      %240 = vmatpush.msra.mxu0 0.0
      %241 = vmatpush.msra.mxu0 0.0
      %242 = vmatpush.msra.mxu0 0.0
      %243 = vmatpush.msra.mxu0 0.0
      %244 = vmatpush.msra.mxu0 0.0
      %245 = vmatpush.msra.mxu0 0.0
      %246 = vmatpush.msra.mxu0 0.0
      %247 = vmatpush.msra.mxu0 0.0
      %248 = vmatpush.msra.mxu0 0.0
      %249 = vmatpush.msra.mxu0 0.0
      %250 = vmatpush.msra.mxu0 0.0
      %251 = vmatpush.msra.mxu0 0.0
      %252 = vmatpush.msra.mxu0 0.0
      %253 = vmatpush.msra.mxu0 0.0
      %254 = vmatpush.msra.mxu0 0.0
      %255 = vmatpush.msra.mxu0 %v228
      %256 = vmatmul.f32.gmra.mxu0 %v236
      %v257 = vpop.f32.mrf.mxu0
      %v258 = vadd.f32 0.0, %v257
      %259 = vmatmul.f32.gmra.mxu0 %v238
      %v260 = vpop.f32.mrf.mxu0
      %v261 = vadd.f32 0.0, %v260
      %262 = vdwg.mxu0
      %v263 = vsel %vm235, %v225, 0
      %v265 = vsel %vm235, %v226, 0
      %267 = vmatpush.msra.mxu0 0.0
      %268 = vmatpush.msra.mxu0 0.0
      %269 = vmatpush.msra.mxu0 0.0
      %270 = vmatpush.msra.mxu0 0.0
      %271 = vmatpush.msra.mxu0 0.0
      %272 = vmatpush.msra.mxu0 0.0
      %273 = vmatpush.msra.mxu0 0.0
      %274 = vmatpush.msra.mxu0 0.0
      %275 = vmatpush.msra.mxu0 0.0
      %276 = vmatpush.msra.mxu0 0.0
      %277 = vmatpush.msra.mxu0 0.0
      %278 = vmatpush.msra.mxu0 0.0
      %279 = vmatpush.msra.mxu0 0.0
      %280 = vmatpush.msra.mxu0 0.0
      %281 = vmatpush.msra.mxu0 0.0
      %282 = vmatpush.msra.mxu0 %v227
      %283 = vmatmul.f32.gmra.mxu0 %v263
      %v284 = vpop.f32.mrf.mxu0
      %v285 = vadd.f32 %v258, %v284
      %286 = vmatmul.f32.gmra.mxu0 %v265
      %v287 = vpop.f32.mrf.mxu0
      %v288 = vadd.f32 %v261, %v287
      %289 = vdwg.mxu0
      %v290 = vld [vmem:[%s1 + $0x10] sm:$0xff]
      %vm291 = vcmask 1045504
      %v292 = vrot.slane %v225, 2
      %v293 = vrot.slane %v226, 2
      %v294 = vsel %vm291, %v292, %v293
      %v295 = vsel %vm235, %v294, 0
      %v297 = vsel %vm235, %v293, 0
      %299 = vmatpush.msra.mxu0 0.0
      %300 = vmatpush.msra.mxu0 0.0
      %301 = vmatpush.msra.mxu0 0.0
      %302 = vmatpush.msra.mxu0 0.0
      %303 = vmatpush.msra.mxu0 0.0
      %304 = vmatpush.msra.mxu0 0.0
      %305 = vmatpush.msra.mxu0 0.0
      %306 = vmatpush.msra.mxu0 0.0
      %307 = vmatpush.msra.mxu0 0.0
      %308 = vmatpush.msra.mxu0 0.0
      %309 = vmatpush.msra.mxu0 0.0
      %310 = vmatpush.msra.mxu0 0.0
      %311 = vmatpush.msra.mxu0 0.0
      %312 = vmatpush.msra.mxu0 0.0
      %313 = vmatpush.msra.mxu0 0.0
      %314 = vmatpush.msra.mxu0 %v290
      %315 = vmatmul.f32.gmra.mxu0 %v295
      %v316 = vpop.f32.mrf.mxu0
      %v317 = vadd.f32 0.0, %v316
      %318 = vmatmul.f32.gmra.mxu0 %v297
      %v319 = vpop.f32.mrf.mxu0
      %v320 = vadd.f32 0.0, %v319
      %321 = vdwg.mxu0
      %v322 = vadd.f32 %v285, %v317
      %v323 = vadd.f32 %v288, %v320
      %v324 = vld [vmem:[%s2] sm:$0x1]
      %v326 = vperm.slane %v324, 0
      %v328 = vadd.f32 %v322, %v326
      %v329 = vadd.f32 %v323, %v326
      %v330 = vmax.f32 %v328, 0.0
      %v331 = vmax.f32 %v329, 0.0
      %v332 = vld [vmem:[%s3] sm:$0xff]
      %v333 = vld [vmem:[%s3 + $0x8] sm:$0xff]
      %v334 = vld [vmem:[%s4] sm:$0x1]
      %v336 = vperm.slane %v334, 0
      %vm338 = vcmask 130048
      %v340 = vsel %vm338, %v330, 0
      %v343 = vsel %vm338, %v331, 0
      %345 = vmatpush.msra.mxu0 0.0
      %346 = vmatpush.msra.mxu0 0.0
      %347 = vmatpush.msra.mxu0 0.0
      %348 = vmatpush.msra.mxu0 0.0
      %349 = vmatpush.msra.mxu0 0.0
      %350 = vmatpush.msra.mxu0 0.0
      %351 = vmatpush.msra.mxu0 0.0
      %352 = vmatpush.msra.mxu0 0.0
      %353 = vmatpush.msra.mxu0 0.0
      %354 = vmatpush.msra.mxu0 0.0
      %355 = vmatpush.msra.mxu0 0.0
      %356 = vmatpush.msra.mxu0 0.0
      %357 = vmatpush.msra.mxu0 0.0
      %358 = vmatpush.msra.mxu0 0.0
      %359 = vmatpush.msra.mxu0 %v333
      %360 = vmatpush.msra.mxu0 %v332
      %361 = vmatmul.f32.gmra.mxu0 %v340
      %v362 = vpop.f32.mrf.mxu0
      %v363 = vadd.f32 %v336, %v362
      %364 = vmatmul.f32.gmra.mxu0 %v343
      %v365 = vpop.f32.mrf.mxu0
      %v366 = vadd.f32 %v336, %v365
      %367 = vdwg.mxu0
      %v368 = vld [vmem:[%s3 + $0x10] sm:$0xff]
      %v369 = vld [vmem:[%s3 + $0x18] sm:$0xff]
      %v370 = vrot.slane %v330, 1
      %v371 = vrot.slane %v331, 1
      %v372 = vsel %vm231, %v370, %v371
      %v373 = vsel %vm338, %v372, 0
      %v375 = vsel %vm338, %v371, 0
      %377 = vmatpush.msra.mxu0 0.0
      %378 = vmatpush.msra.mxu0 0.0
      %379 = vmatpush.msra.mxu0 0.0
      %380 = vmatpush.msra.mxu0 0.0
      %381 = vmatpush.msra.mxu0 0.0
      %382 = vmatpush.msra.mxu0 0.0
      %383 = vmatpush.msra.mxu0 0.0
      %384 = vmatpush.msra.mxu0 0.0
      %385 = vmatpush.msra.mxu0 0.0
      %386 = vmatpush.msra.mxu0 0.0
      %387 = vmatpush.msra.mxu0 0.0
      %388 = vmatpush.msra.mxu0 0.0
      %389 = vmatpush.msra.mxu0 0.0
      %390 = vmatpush.msra.mxu0 0.0
      %391 = vmatpush.msra.mxu0 %v369
      %392 = vmatpush.msra.mxu0 %v368
      %393 = vmatmul.f32.gmra.mxu0 %v373
      %v394 = vpop.f32.mrf.mxu0
      %v395 = vadd.f32 0.0, %v394
      %396 = vmatmul.f32.gmra.mxu0 %v375
      %v397 = vpop.f32.mrf.mxu0
      %v398 = vadd.f32 0.0, %v397
      %399 = vdwg.mxu0
      %v400 = vadd.f32 %v363, %v395
      %v401 = vadd.f32 %v366, %v398
      %v402 = vld [vmem:[%s3 + $0x20] sm:$0xff]
      %v403 = vld [vmem:[%s3 + $0x28] sm:$0xff]
      %v404 = vrot.slane %v330, 2
      %v405 = vrot.slane %v331, 2
      %v406 = vsel %vm291, %v404, %v405
      %v407 = vsel %vm338, %v406, 0
      %v409 = vsel %vm338, %v405, 0
      %411 = vmatpush.msra.mxu0 0.0
      %412 = vmatpush.msra.mxu0 0.0
      %413 = vmatpush.msra.mxu0 0.0
      %414 = vmatpush.msra.mxu0 0.0
      %415 = vmatpush.msra.mxu0 0.0
      %416 = vmatpush.msra.mxu0 0.0
      %417 = vmatpush.msra.mxu0 0.0
      %418 = vmatpush.msra.mxu0 0.0
      %419 = vmatpush.msra.mxu0 0.0
      %420 = vmatpush.msra.mxu0 0.0
      %421 = vmatpush.msra.mxu0 0.0
      %422 = vmatpush.msra.mxu0 0.0
      %423 = vmatpush.msra.mxu0 0.0
      %424 = vmatpush.msra.mxu0 0.0
      %425 = vmatpush.msra.mxu0 %v403
      %426 = vmatpush.msra.mxu0 %v402
      %427 = vmatmul.f32.gmra.mxu0 %v407
      %v428 = vpop.f32.mrf.mxu0
      %v429 = vadd.f32 0.0, %v428
      %430 = vmatmul.f32.gmra.mxu0 %v409
      %v431 = vpop.f32.mrf.mxu0
      %v432 = vadd.f32 0.0, %v431
      %433 = vdwg.mxu0
      %v434 = vadd.f32 %v400, %v429
      %v435 = vadd.f32 %v401, %v432
      %v436 = vld [vmem:[%s3 + $0x30] sm:$0xff]
      %v437 = vld [vmem:[%s3 + $0x38] sm:$0xff]
      %vm438 = vcmask 1044480
      %v439 = vrot.slane %v330, 3
      %v440 = vrot.slane %v331, 3
      %v441 = vsel %vm438, %v439, %v440
      %v442 = vsel %vm338, %v441, 0
      %v444 = vsel %vm338, %v440, 0
      %446 = vmatpush.msra.mxu0 0.0
      %447 = vmatpush.msra.mxu0 0.0
      %448 = vmatpush.msra.mxu0 0.0
      %449 = vmatpush.msra.mxu0 0.0
      %450 = vmatpush.msra.mxu0 0.0
      %451 = vmatpush.msra.mxu0 0.0
      %452 = vmatpush.msra.mxu0 0.0
      %453 = vmatpush.msra.mxu0 0.0
      %454 = vmatpush.msra.mxu0 0.0
      %455 = vmatpush.msra.mxu0 0.0
      %456 = vmatpush.msra.mxu0 0.0
      %457 = vmatpush.msra.mxu0 0.0
      %458 = vmatpush.msra.mxu0 0.0
      %459 = vmatpush.msra.mxu0 0.0
      %460 = vmatpush.msra.mxu0 %v437
      %461 = vmatpush.msra.mxu0 %v436
      %462 = vmatmul.f32.gmra.mxu0 %v442
      %v463 = vpop.f32.mrf.mxu0
      %v464 = vadd.f32 0.0, %v463
      %465 = vmatmul.f32.gmra.mxu0 %v444
      %v466 = vpop.f32.mrf.mxu0
      %v467 = vadd.f32 0.0, %v466
      %468 = vdwg.mxu0
      %v469 = vadd.f32 %v434, %v464
      %v470 = vadd.f32 %v435, %v467
      %v471 = vld [vmem:[%s3 + $0x40] sm:$0xff]
      %v472 = vld [vmem:[%s3 + $0x48] sm:$0xff]
      %vm473 = vcmask 1043456
      %v474 = vrot.slane %v330, 4
      %v475 = vrot.slane %v331, 4
      %v476 = vsel %vm473, %v474, %v475
      %v477 = vsel %vm338, %v476, 0
      %v479 = vsel %vm338, %v475, 0
      %481 = vmatpush.msra.mxu0 0.0
      %482 = vmatpush.msra.mxu0 0.0
      %483 = vmatpush.msra.mxu0 0.0
      %484 = vmatpush.msra.mxu0 0.0
      %485 = vmatpush.msra.mxu0 0.0
      %486 = vmatpush.msra.mxu0 0.0
      %487 = vmatpush.msra.mxu0 0.0
      %488 = vmatpush.msra.mxu0 0.0
      %489 = vmatpush.msra.mxu0 0.0
      %490 = vmatpush.msra.mxu0 0.0
      %491 = vmatpush.msra.mxu0 0.0
      %492 = vmatpush.msra.mxu0 0.0
      %493 = vmatpush.msra.mxu0 0.0
      %494 = vmatpush.msra.mxu0 0.0
      %495 = vmatpush.msra.mxu0 %v472
      %496 = vmatpush.msra.mxu0 %v471
      %497 = vmatmul.f32.gmra.mxu0 %v477
      %v498 = vpop.f32.mrf.mxu0
      %v499 = vadd.f32 0.0, %v498
      %500 = vmatmul.f32.gmra.mxu0 %v479
      %v501 = vpop.f32.mrf.mxu0
      %v502 = vadd.f32 0.0, %v501
      %503 = vdwg.mxu0
      %v504 = vadd.f32 %v469, %v499
      %v505 = vadd.f32 %v470, %v502
      %v506 = vld [vmem:[%s3 + $0x50] sm:$0xff]
      %v507 = vld [vmem:[%s3 + $0x58] sm:$0xff]
      %vm508 = vcmask 1042432
      %v509 = vrot.slane %v330, 5
      %v510 = vrot.slane %v331, 5
      %v511 = vsel %vm508, %v509, %v510
      %v512 = vsel %vm338, %v511, 0
      %v514 = vsel %vm338, %v510, 0
      %516 = vmatpush.msra.mxu0 0.0
      %517 = vmatpush.msra.mxu0 0.0
      %518 = vmatpush.msra.mxu0 0.0
      %519 = vmatpush.msra.mxu0 0.0
      %520 = vmatpush.msra.mxu0 0.0
      %521 = vmatpush.msra.mxu0 0.0
      %522 = vmatpush.msra.mxu0 0.0
      %523 = vmatpush.msra.mxu0 0.0
      %524 = vmatpush.msra.mxu0 0.0
      %525 = vmatpush.msra.mxu0 0.0
      %526 = vmatpush.msra.mxu0 0.0
      %527 = vmatpush.msra.mxu0 0.0
      %528 = vmatpush.msra.mxu0 0.0
      %529 = vmatpush.msra.mxu0 0.0
      %530 = vmatpush.msra.mxu0 %v507
      %531 = vmatpush.msra.mxu0 %v506
      %532 = vmatmul.f32.gmra.mxu0 %v512
      %v533 = vpop.f32.mrf.mxu0
      %v534 = vadd.f32 0.0, %v533
      %535 = vmatmul.f32.gmra.mxu0 %v514
      %v536 = vpop.f32.mrf.mxu0
      %v537 = vadd.f32 0.0, %v536
      %538 = vdwg.mxu0
      %v539 = vadd.f32 %v504, %v534
      %v540 = vadd.f32 %v505, %v537
      %vm541 = vcmask 31744
      %v542 = vsel %vm541, %v225, 0.0
      %543 = vadd.xlane.f32.xlu0 %v542
      %v544 = vpop.xlane.xlu0 %543
      %v545 = vsel %vm541, %v226, 0.0
      %546 = vadd.xlane.f32.xlu0 %v545
      %v547 = vpop.xlane.xlu0 %546
      %548 = vrot.lane.b32.xlu0 %v225, 124
      %v549 = vpop.permute.xlu0 %548
      %550 = vrot.lane.b32.xlu0 %v226, 124
      %v551 = vpop.permute.xlu0 %550
      %v554 = vsel %vm541, %v549, 0.0
      %555 = vadd.xlane.f32.xlu0 %v554
      %v556 = vpop.xlane.xlu0 %555
      %v557 = vsel %vm541, %v551, 0.0
      %558 = vadd.xlane.f32.xlu0 %v557
      %v559 = vpop.xlane.xlu0 %558
      %v562 = vrot.slane %v544, 1
      %v563 = vrot.slane %v547, 1
      %v564 = vsel %vm231, %v562, %v563
      %v567 = vadd.f32 %v556, %v564
      %v568 = vadd.f32 %v559, %v563
      %570 = vset.pattern.permute.xlu0 0
      %571 = vperm.xlu0 %570, %v567
      %v572 = vpop.permute.xlu0 %571
      %574 = vset.pattern.permute.xlu0 0
      %575 = vperm.xlu0 %574, %v568
      %v576 = vpop.permute.xlu0 %575
      %v577 = vrot.slane %v572, 3
      %v578 = vrot.slane %v576, 3
      %v579 = vsel %vm438, %v577, %v578
      %v582 = vadd.f32 %v539, %v579
      %v583 = vadd.f32 %v540, %v578
      %v584 = vmax.f32 %v582, 0.0
      %v585 = vmax.f32 %v583, 0.0
      %586 = vst.msk [vmem:[%s224] sm:$0xff] %vm338, %v584
      %vm587 = vcmask 122880
      %588 = vst.msk [vmem:[%s224 + $0x8] sm:$0x1] %vm587, %v585
      %p589 = scmp.lt.s32.totalorder %s16, 1
      %s590 = scalar_select %p589, %s16, 1
      %s591 = smul.addr %s590, 2
      %s592 = smul.addr %s591, 8
      %s593 = scalar_lea.vmem %s5, %s592
      // Predicated region
      $region41: #{residual_block_forward.1} parent=39 // pred_check
        %p594 = pneg %p144
      $region42: #{residual_block_forward.1} parent=39 // pred_check_branch
        %596 = sbr.rel (%p594) target = $region44
      $region43: #{residual_block_forward.1} parent=39 // pred_region
        _
      $region44: #{residual_block_forward.1} parent=39 // pred_fallthru
        _
    $region40: #{residual_block_forward.1} parent=5 // pred_fallthru
      _
    %p597 = scmp.le.s32.totalorder 2, %s11
    // Predicated region
    $region45: #{residual_block_forward.1} parent=5 // pred_check
      %p598 = pneg %p597
    $region46: #{residual_block_forward.1} parent=5 // pred_check_branch
      %600 = sbr.rel (%p598) target = $region48
    $region47: #{residual_block_forward.1} parent=5 // pred_region
      %s601 = ssub.s32 %s11, 2
      // Predicated region
      $region49: #{residual_block_forward.1} parent=47 // pred_check
        %p602 = pneg %p150
      $region50: #{residual_block_forward.1} parent=47 // pred_check_branch
        %604 = sbr.rel (%p602) target = $region52
      $region51: #{residual_block_forward.1} parent=47 // pred_region
        %p605 = scmp.lt.s32.totalorder %s17, 1
        %s606 = scalar_select %p605, %s17, 1
        %s607 = smul.addr %s606, 2
        %s608 = smul.addr %s607, 8
        %s609 = scalar_lea.vmem %s5, %s608
      $region52: #{residual_block_forward.1} parent=47 // pred_fallthru
        _
    $region48: #{residual_block_forward.1} parent=5 // pred_fallthru
      _
  $region6: #{residual_block_forward.1} parent=0 // loop_footer
    %s15 = sadd.s32 1, %s11
  $region7: #{residual_block_forward.1} parent=0 // loop_footer_branch
    %10 = sbr.rel target = $region3
  $region8: #{residual_block_forward.1} parent=0 // loop_exit
    _

</llo_original>
